<compile_context>
chip_gen: v7x
topology: tpu7x:2x2x1
jax: 0.10.0
libtpu: 0.0.40
codegen_flags: <defaults>
</compile_context>

<pallas_src>
import jax
import jax.numpy as jnp
from jax.experimental import pallas as pl
from jax.experimental.pallas import tpu as pltpu


# ----------------------------------------------------------------------------
# Layout picker: lane width L (multiple of 128), row tile rowT (multiple of 8
# or the full row extent), padded row count.  Targets ~block_target_bytes per
# input block so the double-buffered footprint stays a few MiB on every TPU
# generation (v5e/v6e 128 MiB VMEM, v7x 64 MiB).
# ----------------------------------------------------------------------------
def _choose_layout(n_elems, itemsize, target_bytes):
    lane = 128
    for cand in (512, 256, 128):
        if n_elems % cand == 0:
            lane = cand
            break
    rows = -(-n_elems // lane)                       # ceil
    max_rows = max(8, (target_bytes // (lane * itemsize)) // 8 * 8)
    if rows <= max_rows:
        row_t = rows                                  # single tile per sample
    else:
        row_t = 0
        r = max_rows
        while r >= 8:                                 # largest /8 divisor
            if rows % r == 0:
                row_t = r
                break
            r -= 8
        if row_t == 0:                                # no divisor: pad rows
            row_t = max_rows
    rows_pad = -(-rows // row_t) * row_t
    return lane, row_t, rows_pad


# ----------------------------------------------------------------------------
# Kernel factory.  Per grid step (sample b, row-tile t) it accumulates
#   lane 0: sum((out - mask)^2)        over all channels
#   lane 1: sum(mask[ch0])   lane 2: sum(out[ch0])   lane 3: sum(out*mask)[ch0]
# into the per-sample (1,128) output accumulator.
# ----------------------------------------------------------------------------
def _make_kernel(row_t, lane, hw):
    tile_elems = row_t * lane

    def kernel(o_ref, m_ref, acc_ref):
        t = pl.program_id(1)

        o = o_ref[...].astype(jnp.float32)
        m = m_ref[...].astype(jnp.float32)
        d = o - m
        sse = jnp.sum(d * d, keepdims=True)            # (1,1)

        lanes = jax.lax.broadcasted_iota(jnp.int32, (1, 128), 1)

        @pl.when(t == 0)
        def _():
            acc_ref[...] = jnp.zeros_like(acc_ref)

        acc_ref[...] += jnp.where(lanes == 0, sse, 0.0)

        start = t * tile_elems                          # flat offset of tile

        def dice_row(o0, m0):
            sm = jnp.sum(m0, keepdims=True)
            so = jnp.sum(o0, keepdims=True)
            si = jnp.sum(o0 * m0, keepdims=True)
            return (jnp.where(lanes == 1, sm, 0.0)
                    + jnp.where(lanes == 2, so, 0.0)
                    + jnp.where(lanes == 3, si, 0.0))

        # Tile fully inside channel 0: unmasked dice sums.
        @pl.when(start + tile_elems <= hw)
        def _():
            acc_ref[...] += dice_row(o, m)

        # Tile straddles the channel-0 boundary: per-element flat-index mask.
        @pl.when((start < hw) & (start + tile_elems > hw))
        def _():
            flat = (start
                    + jax.lax.broadcasted_iota(jnp.int32, (row_t, lane), 0) * lane
                    + jax.lax.broadcasted_iota(jnp.int32, (row_t, lane), 1))
            keep = flat < hw
            o0 = jnp.where(keep, o, 0.0)
            m0 = jnp.where(keep, m, 0.0)
            acc_ref[...] += dice_row(o0, m0)

        # Tiles entirely past channel 0 do no dice work at all.

    return kernel


# ----------------------------------------------------------------------------
# Wrapper: output/mask in NCHW (like PyTorch), native dtype, returns the
# scalar averaged composite loss.
# ----------------------------------------------------------------------------
def mse_plus_dice_loss(output, mask_tensor, *, epsilon=0.01,
                       block_target_bytes=2 * 1024 * 1024):
    B = min(output.shape[0], mask_tensor.shape[0])
    assert B <= 4, "loss buffers in the reference module are (1,4): batch must be <= 4"
    assert output.shape[1:] == mask_tensor.shape[1:], "per-sample shapes must match"
    C, H, W = output.shape[1:]
    HW = H * W
    N = C * HW

    itemsize = max(jnp.dtype(output.dtype).itemsize,
                   jnp.dtype(mask_tensor.dtype).itemsize)
    lane, row_t, rows_pad = _choose_layout(N, itemsize, block_target_bytes)
    N_pad = rows_pad * lane
    n_t = rows_pad // row_t

    def to_slabs(x):
        xf = x[:B].reshape(B, N)
        if N_pad != N:
            # zero padding contributes 0 to every statistic
            xf = jnp.pad(xf, ((0, 0), (0, N_pad - N)))
        return xf.reshape(B, rows_pad, lane)

    out_slab = to_slabs(output)
    msk_slab = to_slabs(mask_tensor)

    kernel = _make_kernel(row_t, lane, HW)

    bytes_accessed = (B * N_pad
                      * (jnp.dtype(output.dtype).itemsize
                         + jnp.dtype(mask_tensor.dtype).itemsize)
                      + B * 128 * 4)

    sums = pl.pallas_call(
        kernel,
        out_shape=jax.ShapeDtypeStruct((B, 1, 128), jnp.float32),
        grid=(B, n_t),
        in_specs=[
            pl.BlockSpec((None, row_t, lane), lambda b, t: (b, t, 0)),
            pl.BlockSpec((None, row_t, lane), lambda b, t: (b, t, 0)),
        ],
        out_specs=pl.BlockSpec((None, 1, 128), lambda b, t: (b, 0, 0)),
        compiler_params=pltpu.CompilerParams(
            # batch axis is independent (per-sample output block) -> megacore;
            # row-tile axis carries the accumulator -> arbitrary, last in grid.
            dimension_semantics=("parallel", "arbitrary"),
            vmem_limit_bytes=32 * 1024 * 1024),
        cost_estimate=pl.CostEstimate(
            flops=6 * B * N_pad,
            transcendentals=0,
            bytes_accessed=int(bytes_accessed)),
    )(out_slab, msk_slab)

    # Tiny per-sample recurrence of the PyTorch forward, in plain JAX.
    sse = sums[:, 0, 0]
    sm = sums[:, 0, 1]
    so = sums[:, 0, 2]
    si = sums[:, 0, 3]
    eps = jnp.float32(epsilon)

    dice_e = jnp.where(sm + so > 0.0,
                       1.0 - (2.0 * si + eps) / (so + sm + eps), 0.0)
    mse_e = jnp.where((sm > 0.0) & (so > 0.0), sse / float(N), 0.0)

    dice_cum = jnp.cumsum(dice_e)                     # torch.sum(dice_loss) at step idx
    mse_cum = jnp.cumsum(mse_e)                       # torch.sum(mse_loss) at step idx
    comp = jnp.where((mse_cum > 0.0) & (dice_cum > 0.0),
                     mse_cum + 30.0 * dice_cum, 0.0)  # composite_loss[0, idx]
    return jnp.sum(comp) / float(B)


# ----------------------------------------------------------------------------
# Pure-JAX reference mirroring the PyTorch forward exactly.
# ----------------------------------------------------------------------------
def ref_forward(output, mask_tensor, epsilon=0.01):
    B = min(output.shape[0], mask_tensor.shape[0])
    dice = jnp.zeros((4,), jnp.float32)
    mse = jnp.zeros((4,), jnp.float32)
    comp = jnp.zeros((4,), jnp.float32)
    for idx in range(B):
        m = mask_tensor[idx, 0].astype(jnp.float32)
        o = output[idx, 0].astype(jnp.float32)
        sm = jnp.sum(m)
        so = jnp.sum(o)
        inter = jnp.sum(o * m)
        dice_val = 1.0 - (2.0 * inter + epsilon) / (so + sm + epsilon)
        dice = dice.at[idx].set(jnp.where((sm + so) > 0, dice_val, dice[idx]))
        mse_val = jnp.mean((output[idx].astype(jnp.float32)
                            - mask_tensor[idx].astype(jnp.float32)) ** 2)
        mse = mse.at[idx].set(jnp.where((sm > 0) & (so > 0), mse_val, mse[idx]))
        cond = (jnp.sum(mse) > 0) & (jnp.sum(dice) > 0)
        comp = comp.at[idx].set(
            jnp.where(cond, jnp.sum(mse) + 30.0 * jnp.sum(dice), comp[idx]))
    return jnp.sum(comp) / B


if __name__ == "__main__":
    key = jax.random.PRNGKey(0)

    # (B, C, H, W, zero_mask_sample, negate_out_ch0_sample, block_target_bytes)
    configs = [
        (4, 4, 16, 16, None, None, None),        # single straddling tile, all branches
        (2, 4, 16, 16, 0,    None, None),        # sample 0: empty mask -> mse/comp gated off
        (2, 4, 64, 64, None, None, 16 * 1024),   # 4 row-tiles: fully-in + fully-out dice gating
        (2, 3, 48, 48, 1,    1,    16 * 1024),   # padding + straddle + multi-tile accumulation;
                                                 # sample 1: empty mask + negative ch0 -> dice off
        (2, 3, 10, 10, None, None, None),        # H*W*C not /128 -> lane fallback + zero padding
    ]

    for i, (B, C, H, W, zero_idx, neg_idx, tb) in enumerate(configs):
        ko, km = jax.random.split(jax.random.fold_in(key, i))
        out = jax.random.uniform(ko, (B, C, H, W), jnp.float32, 0.1, 1.0)
        mask = (jax.random.uniform(km, (B, C, H, W), jnp.float32) > 0.7).astype(jnp.float32)
        if zero_idx is not None:
            mask = mask.at[zero_idx].set(0.0)
        if neg_idx is not None:
            out = out.at[neg_idx, 0].set(-jnp.abs(out[neg_idx, 0]) - 0.1)

        kwargs = {} if tb is None else {"block_target_bytes": tb}
        y = jax.block_until_ready(mse_plus_dice_loss(out, mask, **kwargs))
        y_ref = jax.block_until_ready(ref_forward(out, mask))

        err = float(jnp.abs(y - y_ref))
        assert jnp.allclose(y, y_ref, rtol=1e-3, atol=1e-3), (i, float(y), float(y_ref), err)

    print("KERNEL_OK")
</pallas_src>

<mosaic_0001>
module attributes {stable_mosaic.version = 11 : i64} {
  func.func @kernel(%arg0: i32, %arg1: i32, %arg2: memref<1x2x512xf32, #tpu.memory_space<vmem>>, %arg3: memref<1x2x512xf32, #tpu.memory_space<vmem>>, %arg4: memref<1x1x128xf32, #tpu.memory_space<vmem>>) attributes {dimension_semantics = [#tpu.dimension_semantics<parallel>, #tpu.dimension_semantics<arbitrary>], iteration_bounds = array<i64: 4, 1>, scalar_prefetch = 0 : i64, scratch_operands = 0 : i64, tpu.core_type = #tpu.core_type<tc>, window_params = [{transform_indices = @transform_0, window_bounds = array<i64: 1, 2, 512>}, {transform_indices = @transform_1, window_bounds = array<i64: 1, 2, 512>}, {transform_indices = @transform_2, window_bounds = array<i64: 1, 1, 128>}]} {
    %c0 = arith.constant 0 : index
    %c0_0 = arith.constant 0 : index
    %c0_1 = arith.constant 0 : index
    %0 = vector.load %arg2[%c0, %c0_0, %c0_1] : memref<1x2x512xf32, #tpu.memory_space<vmem>>, vector<1x2x512xf32>
    %1 = vector.shape_cast %0 : vector<1x2x512xf32> to vector<2x512xf32>
    %c0_2 = arith.constant 0 : index
    %c0_3 = arith.constant 0 : index
    %c0_4 = arith.constant 0 : index
    %2 = vector.load %arg3[%c0_2, %c0_3, %c0_4] : memref<1x2x512xf32, #tpu.memory_space<vmem>>, vector<1x2x512xf32>
    %3 = vector.shape_cast %2 : vector<1x2x512xf32> to vector<2x512xf32>
    %4 = arith.subf %1, %3 : vector<2x512xf32>
    %5 = arith.mulf %4, %4 : vector<2x512xf32>
    %6 = vector.shape_cast %5 : vector<2x512xf32> to vector<1x2x512xf32>
    %cst = arith.constant dense<0.000000e+00> : vector<1xf32>
    %7 = vector.multi_reduction <add>, %6, %cst [1, 2] : vector<1x2x512xf32> to vector<1xf32>
    %8 = vector.shape_cast %7 : vector<1xf32> to vector<1x1x1xf32>
    %9 = vector.extract %8[0, 0, 0] : f32 from vector<1x1x1xf32>
    %10 = vector.broadcast %9 : f32 to vector<1x1xf32>
    %11 = tpu.iota {dimensions = array<i32: 1>} : vector<1x128xi32>
    %c0_i32 = arith.constant 0 : i32
    %12 = arith.cmpi eq, %arg1, %c0_i32 : i32
    %13 = arith.extui %12 : i1 to i32
    %c0_i32_5 = arith.constant 0 : i32
    %14 = arith.cmpi ne, %13, %c0_i32_5 : i32
    scf.if %14 {
      %cst_20 = arith.constant 0.000000e+00 : f32
      %38 = vector.broadcast %cst_20 : f32 to vector<1x128xf32>
      %c0_21 = arith.constant 0 : index
      %c0_22 = arith.constant 0 : index
      %c0_23 = arith.constant 0 : index
      %39 = vector.load %arg4[%c0_21, %c0_22, %c0_23] : memref<1x1x128xf32, #tpu.memory_space<vmem>>, vector<1x1x128xf32>
      %40 = vector.shape_cast %39 : vector<1x1x128xf32> to vector<1x128xf32>
      %41 = vector.shape_cast %38 : vector<1x128xf32> to vector<1x1x128xf32>
      tpu.vector_store %arg4[%c0_21, %c0_22, %c0_23], %41 {strides = array<i32>} : memref<1x1x128xf32, #tpu.memory_space<vmem>>, vector<1x1x128xf32>,
    } else {
    }
    %c0_6 = arith.constant 0 : index
    %c0_7 = arith.constant 0 : index
    %c0_8 = arith.constant 0 : index
    %15 = vector.load %arg4[%c0_6, %c0_7, %c0_8] : memref<1x1x128xf32, #tpu.memory_space<vmem>>, vector<1x1x128xf32>
    %16 = vector.shape_cast %15 : vector<1x1x128xf32> to vector<1x128xf32>
    %c0_i32_9 = arith.constant 0 : i32
    %17 = vector.broadcast %c0_i32_9 : i32 to vector<1x128xi32>
    %18 = arith.cmpi eq, %11, %17 : vector<1x128xi32>
    %cst_10 = arith.constant 0.000000e+00 : f32
    %19 = vector.shape_cast %10 : vector<1x1xf32> to vector<1x1xf32>
    %20 = vector.broadcast %19 : vector<1x1xf32> to vector<1x128xf32>
    %21 = vector.broadcast %cst_10 : f32 to vector<1x128xf32>
    %22 = arith.select %18, %20, %21 : vector<1x128xi1>, vector<1x128xf32>
    %23 = arith.addf %16, %22 : vector<1x128xf32>
    %c0_11 = arith.constant 0 : index
    %c0_12 = arith.constant 0 : index
    %c0_13 = arith.constant 0 : index
    %24 = vector.load %arg4[%c0_11, %c0_12, %c0_13] : memref<1x1x128xf32, #tpu.memory_space<vmem>>, vector<1x1x128xf32>
    %25 = vector.shape_cast %24 : vector<1x1x128xf32> to vector<1x128xf32>
    %26 = vector.shape_cast %23 : vector<1x128xf32> to vector<1x1x128xf32>
    tpu.vector_store %arg4[%c0_11, %c0_12, %c0_13], %26 {strides = array<i32>} : memref<1x1x128xf32, #tpu.memory_space<vmem>>, vector<1x1x128xf32>,
    %c1024_i32 = arith.constant 1024 : i32
    %27 = arith.muli %arg1, %c1024_i32 : i32
    %c1024_i32_14 = arith.constant 1024 : i32
    %28 = arith.addi %27, %c1024_i32_14 : i32
    %c256_i32 = arith.constant 256 : i32
    %29 = arith.cmpi sle, %28, %c256_i32 : i32
    %30 = arith.extui %29 : i1 to i32
    %c0_i32_15 = arith.constant 0 : i32
    %31 = arith.cmpi ne, %30, %c0_i32_15 : i32
    scf.if %31 {
      %c0_20 = arith.constant 0 : index
      %c0_21 = arith.constant 0 : index
      %c0_22 = arith.constant 0 : index
      %38 = vector.load %arg4[%c0_20, %c0_21, %c0_22] : memref<1x1x128xf32, #tpu.memory_space<vmem>>, vector<1x1x128xf32>
      %39 = vector.shape_cast %38 : vector<1x1x128xf32> to vector<1x128xf32>
      %40 = vector.shape_cast %3 : vector<2x512xf32> to vector<1x2x512xf32>
      %cst_23 = arith.constant dense<0.000000e+00> : vector<1xf32>
      %41 = vector.multi_reduction <add>, %40, %cst_23 [1, 2] : vector<1x2x512xf32> to vector<1xf32>
      %42 = vector.shape_cast %41 : vector<1xf32> to vector<1x1x1xf32>
      %43 = vector.extract %42[0, 0, 0] : f32 from vector<1x1x1xf32>
      %44 = vector.broadcast %43 : f32 to vector<1x1xf32>
      %45 = vector.shape_cast %1 : vector<2x512xf32> to vector<1x2x512xf32>
      %cst_24 = arith.constant dense<0.000000e+00> : vector<1xf32>
      %46 = vector.multi_reduction <add>, %45, %cst_24 [1, 2] : vector<1x2x512xf32> to vector<1xf32>
      %47 = vector.shape_cast %46 : vector<1xf32> to vector<1x1x1xf32>
      %48 = vector.extract %47[0, 0, 0] : f32 from vector<1x1x1xf32>
      %49 = vector.broadcast %48 : f32 to vector<1x1xf32>
      %50 = arith.mulf %1, %3 : vector<2x512xf32>
      %51 = vector.shape_cast %50 : vector<2x512xf32> to vector<1x2x512xf32>
      %cst_25 = arith.constant dense<0.000000e+00> : vector<1xf32>
      %52 = vector.multi_reduction <add>, %51, %cst_25 [1, 2] : vector<1x2x512xf32> to vector<1xf32>
      %53 = vector.shape_cast %52 : vector<1xf32> to vector<1x1x1xf32>
      %54 = vector.extract %53[0, 0, 0] : f32 from vector<1x1x1xf32>
      %55 = vector.broadcast %54 : f32 to vector<1x1xf32>
      %c1_i32 = arith.constant 1 : i32
      %56 = vector.broadcast %c1_i32 : i32 to vector<1x128xi32>
      %57 = arith.cmpi eq, %11, %56 : vector<1x128xi32>
      %cst_26 = arith.constant 0.000000e+00 : f32
      %58 = vector.shape_cast %44 : vector<1x1xf32> to vector<1x1xf32>
      %59 = vector.broadcast %58 : vector<1x1xf32> to vector<1x128xf32>
      %60 = vector.broadcast %cst_26 : f32 to vector<1x128xf32>
      %61 = arith.select %57, %59, %60 : vector<1x128xi1>, vector<1x128xf32>
      %c2_i32 = arith.constant 2 : i32
      %62 = vector.broadcast %c2_i32 : i32 to vector<1x128xi32>
      %63 = arith.cmpi eq, %11, %62 : vector<1x128xi32>
      %cst_27 = arith.constant 0.000000e+00 : f32
      %64 = vector.shape_cast %49 : vector<1x1xf32> to vector<1x1xf32>
      %65 = vector.broadcast %64 : vector<1x1xf32> to vector<1x128xf32>
      %66 = vector.broadcast %cst_27 : f32 to vector<1x128xf32>
      %67 = arith.select %63, %65, %66 : vector<1x128xi1>, vector<1x128xf32>
      %68 = arith.addf %61, %67 : vector<1x128xf32>
      %c3_i32 = arith.constant 3 : i32
      %69 = vector.broadcast %c3_i32 : i32 to vector<1x128xi32>
      %70 = arith.cmpi eq, %11, %69 : vector<1x128xi32>
      %cst_28 = arith.constant 0.000000e+00 : f32
      %71 = vector.shape_cast %55 : vector<1x1xf32> to vector<1x1xf32>
      %72 = vector.broadcast %71 : vector<1x1xf32> to vector<1x128xf32>
      %73 = vector.broadcast %cst_28 : f32 to vector<1x128xf32>
      %74 = arith.select %70, %72, %73 : vector<1x128xi1>, vector<1x128xf32>
      %75 = arith.addf %68, %74 : vector<1x128xf32>
      %76 = arith.addf %39, %75 : vector<1x128xf32>
      %c0_29 = arith.constant 0 : index
      %c0_30 = arith.constant 0 : index
      %c0_31 = arith.constant 0 : index
      %77 = vector.load %arg4[%c0_29, %c0_30, %c0_31] : memref<1x1x128xf32, #tpu.memory_space<vmem>>, vector<1x1x128xf32>
      %78 = vector.shape_cast %77 : vector<1x1x128xf32> to vector<1x128xf32>
      %79 = vector.shape_cast %76 : vector<1x128xf32> to vector<1x1x128xf32>
      tpu.vector_store %arg4[%c0_29, %c0_30, %c0_31], %79 {strides = array<i32>} : memref<1x1x128xf32, #tpu.memory_space<vmem>>, vector<1x1x128xf32>,
    } else {
    }
    %c256_i32_16 = arith.constant 256 : i32
    %32 = arith.cmpi slt, %27, %c256_i32_16 : i32
    %c1024_i32_17 = arith.constant 1024 : i32
    %33 = arith.addi %27, %c1024_i32_17 : i32
    %c256_i32_18 = arith.constant 256 : i32
    %34 = arith.cmpi sgt, %33, %c256_i32_18 : i32
    %35 = arith.andi %32, %34 : i1
    %36 = arith.extui %35 : i1 to i32
    %c0_i32_19 = arith.constant 0 : i32
    %37 = arith.cmpi ne, %36, %c0_i32_19 : i32
    scf.if %37 {
      %38 = tpu.iota {dimensions = array<i32: 0>} : vector<2x512xi32>
      %c512_i32 = arith.constant 512 : i32
      %39 = vector.broadcast %c512_i32 : i32 to vector<2x512xi32>
      %40 = arith.muli %38, %39 : vector<2x512xi32>
      %41 = vector.broadcast %27 : i32 to vector<2x512xi32>
      %42 = arith.addi %41, %40 : vector<2x512xi32>
      %43 = tpu.iota {dimensions = array<i32: 1>} : vector<2x512xi32>
      %44 = arith.addi %42, %43 : vector<2x512xi32>
      %c256_i32_20 = arith.constant 256 : i32
      %45 = vector.broadcast %c256_i32_20 : i32 to vector<2x512xi32>
      %46 = arith.cmpi slt, %44, %45 : vector<2x512xi32>
      %cst_21 = arith.constant 0.000000e+00 : f32
      %47 = vector.broadcast %cst_21 : f32 to vector<2x512xf32>
      %48 = arith.select %46, %1, %47 : vector<2x512xi1>, vector<2x512xf32>
      %cst_22 = arith.constant 0.000000e+00 : f32
      %49 = vector.broadcast %cst_22 : f32 to vector<2x512xf32>
      %50 = arith.select %46, %3, %49 : vector<2x512xi1>, vector<2x512xf32>
      %c0_23 = arith.constant 0 : index
      %c0_24 = arith.constant 0 : index
      %c0_25 = arith.constant 0 : index
      %51 = vector.load %arg4[%c0_23, %c0_24, %c0_25] : memref<1x1x128xf32, #tpu.memory_space<vmem>>, vector<1x1x128xf32>
      %52 = vector.shape_cast %51 : vector<1x1x128xf32> to vector<1x128xf32>
      %53 = vector.shape_cast %50 : vector<2x512xf32> to vector<1x2x512xf32>
      %cst_26 = arith.constant dense<0.000000e+00> : vector<1xf32>
      %54 = vector.multi_reduction <add>, %53, %cst_26 [1, 2] : vector<1x2x512xf32> to vector<1xf32>
      %55 = vector.shape_cast %54 : vector<1xf32> to vector<1x1x1xf32>
      %56 = vector.extract %55[0, 0, 0] : f32 from vector<1x1x1xf32>
      %57 = vector.broadcast %56 : f32 to vector<1x1xf32>
      %58 = vector.shape_cast %48 : vector<2x512xf32> to vector<1x2x512xf32>
      %cst_27 = arith.constant dense<0.000000e+00> : vector<1xf32>
      %59 = vector.multi_reduction <add>, %58, %cst_27 [1, 2] : vector<1x2x512xf32> to vector<1xf32>
      %60 = vector.shape_cast %59 : vector<1xf32> to vector<1x1x1xf32>
      %61 = vector.extract %60[0, 0, 0] : f32 from vector<1x1x1xf32>
      %62 = vector.broadcast %61 : f32 to vector<1x1xf32>
      %63 = arith.mulf %48, %50 : vector<2x512xf32>
      %64 = vector.shape_cast %63 : vector<2x512xf32> to vector<1x2x512xf32>
      %cst_28 = arith.constant dense<0.000000e+00> : vector<1xf32>
      %65 = vector.multi_reduction <add>, %64, %cst_28 [1, 2] : vector<1x2x512xf32> to vector<1xf32>
      %66 = vector.shape_cast %65 : vector<1xf32> to vector<1x1x1xf32>
      %67 = vector.extract %66[0, 0, 0] : f32 from vector<1x1x1xf32>
      %68 = vector.broadcast %67 : f32 to vector<1x1xf32>
      %c1_i32 = arith.constant 1 : i32
      %69 = vector.broadcast %c1_i32 : i32 to vector<1x128xi32>
      %70 = arith.cmpi eq, %11, %69 : vector<1x128xi32>
      %cst_29 = arith.constant 0.000000e+00 : f32
      %71 = vector.shape_cast %57 : vector<1x1xf32> to vector<1x1xf32>
      %72 = vector.broadcast %71 : vector<1x1xf32> to vector<1x128xf32>
      %73 = vector.broadcast %cst_29 : f32 to vector<1x128xf32>
      %74 = arith.select %70, %72, %73 : vector<1x128xi1>, vector<1x128xf32>
      %c2_i32 = arith.constant 2 : i32
      %75 = vector.broadcast %c2_i32 : i32 to vector<1x128xi32>
      %76 = arith.cmpi eq, %11, %75 : vector<1x128xi32>
      %cst_30 = arith.constant 0.000000e+00 : f32
      %77 = vector.shape_cast %62 : vector<1x1xf32> to vector<1x1xf32>
      %78 = vector.broadcast %77 : vector<1x1xf32> to vector<1x128xf32>
      %79 = vector.broadcast %cst_30 : f32 to vector<1x128xf32>
      %80 = arith.select %76, %78, %79 : vector<1x128xi1>, vector<1x128xf32>
      %81 = arith.addf %74, %80 : vector<1x128xf32>
      %c3_i32 = arith.constant 3 : i32
      %82 = vector.broadcast %c3_i32 : i32 to vector<1x128xi32>
      %83 = arith.cmpi eq, %11, %82 : vector<1x128xi32>
      %cst_31 = arith.constant 0.000000e+00 : f32
      %84 = vector.shape_cast %68 : vector<1x1xf32> to vector<1x1xf32>
      %85 = vector.broadcast %84 : vector<1x1xf32> to vector<1x128xf32>
      %86 = vector.broadcast %cst_31 : f32 to vector<1x128xf32>
      %87 = arith.select %83, %85, %86 : vector<1x128xi1>, vector<1x128xf32>
      %88 = arith.addf %81, %87 : vector<1x128xf32>
      %89 = arith.addf %52, %88 : vector<1x128xf32>
      %c0_32 = arith.constant 0 : index
      %c0_33 = arith.constant 0 : index
      %c0_34 = arith.constant 0 : index
      %90 = vector.load %arg4[%c0_32, %c0_33, %c0_34] : memref<1x1x128xf32, #tpu.memory_space<vmem>>, vector<1x1x128xf32>
      %91 = vector.shape_cast %90 : vector<1x1x128xf32> to vector<1x128xf32>
      %92 = vector.shape_cast %89 : vector<1x128xf32> to vector<1x1x128xf32>
      tpu.vector_store %arg4[%c0_32, %c0_33, %c0_34], %92 {strides = array<i32>} : memref<1x1x128xf32, #tpu.memory_space<vmem>>, vector<1x1x128xf32>,
    } else {
    }
    return
  }
  func.func @transform_0(%arg0: i32, %arg1: i32) -> (i32, i32, i32) {
    %c0_i32 = arith.constant 0 : i32
    %c0_i32_0 = arith.constant 0 : i32
    return %arg0, %arg1, %c0_i32 : i32, i32, i32
  }
  func.func @transform_1(%arg0: i32, %arg1: i32) -> (i32, i32, i32) {
    %c0_i32 = arith.constant 0 : i32
    %c0_i32_0 = arith.constant 0 : i32
    return %arg0, %arg1, %c0_i32 : i32, i32, i32
  }
  func.func @transform_2(%arg0: i32, %arg1: i32) -> (i32, i32, i32) {
    %c0_i32 = arith.constant 0 : i32
    %c0_i32_0 = arith.constant 0 : i32
    %c0_i32_1 = arith.constant 0 : i32
    return %arg0, %c0_i32, %c0_i32_0 : i32, i32, i32
  }
}

</mosaic_0001>

<llo_original>
// kernel: tpu_custom_call.1
$region0: #{tpu_custom_call.1}
  #allocation0 [shape = 'u32[]', space=smem, size = 0x4, offset = 0x4, fixed_abs, tag = 'smem constant byte address 0x4 - core index']
  #allocation1 [shape = 'u32[144,128]{1,0:T(1,128)}', space=vmem, size = 0x12000, scoped, tag = 'internal scratch']
  %s0 = inlined_call_operand.hbm [shape: f32[4,2,512], index: 0, kind: input, shape index: {}]
  %s1 = inlined_call_operand.hbm [shape: f32[4,2,512], index: 1, kind: input, shape index: {}]
  %s2 = inlined_call_operand.hbm [shape: f32[4,1,128], index: 2, kind: output, shape index: {}]
  %s3 = sld [smem:[#allocation0]]
  $region61: #{tpu_custom_call.1} parent=0
    _
  %s5 = ssub.s32 1, %s3
  %s6 = scalar_select 0, %s5, %s3
  $region1: #{tpu_custom_call.1} parent=0
    #allocation2 [shape = 'u8[8192]{0}', space=vmem, size = 0x2000, scoped, tag = 'input window, operand 0']
    #allocation3 [shape = 's32[2]{0}', space=sflag, size = 0x8, scoped, tag = 'scoped memory for tpu_custom_call.1']
    #allocation4 [shape = 's32[2]{0}', space=sflag, size = 0x8, scoped, tag = 'scoped memory for tpu_custom_call.1']
    #allocation5 [shape = 'u8[8192]{0}', space=vmem, size = 0x2000, scoped, tag = 'input window, operand 1']
    #allocation6 [shape = 's32[2]{0}', space=sflag, size = 0x8, scoped, tag = 'scoped memory for tpu_custom_call.1']
    #allocation7 [shape = 'u8[1024]{0}', space=vmem, size = 0x400, scoped, tag = 'output window, operand 0']
    %7 = vsyncpa [#allocation3], 0
    %s8 = scalar_lea.sflag [#allocation3], 1
    %9 = vsyncpa %s8, 0
    %10 = vsyncpa [#allocation6], 0
    %s11 = scalar_lea.sflag [#allocation6], 1
    %12 = vsyncpa %s11, 0
    %13 = vsyncpa [#allocation4], 0
    %s14 = scalar_lea.sflag [#allocation4], 1
    %15 = vsyncpa %s14, 0
    loop: start=0, step=1, limit=6
    $region2: #{tpu_custom_call.1} parent=1 // loop_pre_header
      _
    $region3: #{tpu_custom_call.1} parent=1 // loop_header
      %s17 = sphi 0, %s21
      %p18 = scmp.ge.s32.totalorder %s17, 6
      %s24 = sphi 0, %s36
      %s25 = sphi 0, %s32
      %s26 = sphi 0, %s24
      %s27 = sphi 0, %s25
      %s28 = sphi 0, %s26
      %s29 = sphi 0, %s27
      %s41 = sphi 0, %s43
      %s44 = sphi 0, %s41
      %s45 = sphi 0, %s44
      %s61 = sphi 0, %s45
      %s69 = sphi 0, %s71
      %s72 = sphi 0, %s69
      %s73 = sphi 0, %s72
      %s89 = sphi 0, %s73
      %s95 = sphi 0, %s97
      %s98 = sphi 0, %s95
      %s99 = sphi 0, %s98
      %s115 = sphi 0, %s99
    $region4: #{tpu_custom_call.1} parent=1 // loop_header_branch
      %20 = sbr.rel (%p18) target = $region8
    $region5: #{tpu_custom_call.1} parent=1 // loop_body
      %s22 = ssub.s32 %s17, 1
      %s23 = ssub.s32 %s17, 2
      %s30 = sadd.s32 1, %s25
      %p31 = scmp.ge.s32.totalorder %s30, 1
      %s32 = scalar_select %p31, 0, %s30
      %s33 = sadd.s32 1, %s24
      %s34 = scalar_select %p31, %s33, %s24
      %p35 = scmp.ge.s32.totalorder %s34, 4
      %s36 = scalar_select %p35, 0, %s34
      %s37 = ssub.s32 %s24, %s36
      %s38 = ssub.s32 %s25, %s32
      %s39 = sor.u32 %s37, %s38
      %p40 = scmp.eq.s32.totalorder %s39, 0
      %s42 = sadd.s32 %s41, 1
      %s43 = scalar_select %p40, %s41, %s42
      %p46 = pneg %p40
      %p47 = scmp.eq.s32.totalorder %s17, 3
      %p48 = por %p46, %p47
      %p49 = scmp.ne.s32.totalorder %s41, %s44
      %p50 = scmp.eq.s32.totalorder %s17, 0
      %p51 = por %p49, %p50
      %p52 = scmp.ne.s32.totalorder %s41, %s44
      %p53 = scmp.eq.s32.totalorder %s22, 3
      %p54 = por %p52, %p53
      %p55 = scmp.ne.s32.totalorder %s44, %s45
      %p56 = scmp.eq.s32.totalorder %s22, 0
      %p57 = por %p55, %p56
      %p58 = scmp.ne.s32.totalorder %s44, %s45
      %p59 = scmp.eq.s32.totalorder %s23, 3
      %p60 = por %p58, %p59
      %p62 = scmp.ne.s32.totalorder %s45, %s61
      %p63 = scmp.eq.s32.totalorder %s23, 0
      %p64 = por %p62, %p63
      %s65 = ssub.s32 %s24, %s36
      %s66 = ssub.s32 %s25, %s32
      %s67 = sor.u32 %s65, %s66
      %p68 = scmp.eq.s32.totalorder %s67, 0
      %s70 = sadd.s32 %s69, 1
      %s71 = scalar_select %p68, %s69, %s70
      %p74 = pneg %p68
      %p75 = scmp.eq.s32.totalorder %s17, 3
      %p76 = por %p74, %p75
      %p77 = scmp.ne.s32.totalorder %s69, %s72
      %p78 = scmp.eq.s32.totalorder %s17, 0
      %p79 = por %p77, %p78
      %p80 = scmp.ne.s32.totalorder %s69, %s72
      %p81 = scmp.eq.s32.totalorder %s22, 3
      %p82 = por %p80, %p81
      %p83 = scmp.ne.s32.totalorder %s72, %s73
      %p84 = scmp.eq.s32.totalorder %s22, 0
      %p85 = por %p83, %p84
      %p86 = scmp.ne.s32.totalorder %s72, %s73
      %p87 = scmp.eq.s32.totalorder %s23, 3
      %p88 = por %p86, %p87
      %p90 = scmp.ne.s32.totalorder %s73, %s89
      %p91 = scmp.eq.s32.totalorder %s23, 0
      %p92 = por %p90, %p91
      %s93 = ssub.s32 %s24, %s36
      %p94 = scmp.eq.s32.totalorder %s93, 0
      %s96 = sadd.s32 %s95, 1
      %s97 = scalar_select %p94, %s95, %s96
      %p100 = pneg %p94
      %p101 = scmp.eq.s32.totalorder %s17, 3
      %p102 = por %p100, %p101
      %p103 = scmp.ne.s32.totalorder %s95, %s98
      %p104 = scmp.eq.s32.totalorder %s17, 0
      %p105 = por %p103, %p104
      %p106 = scmp.ne.s32.totalorder %s95, %s98
      %p107 = scmp.eq.s32.totalorder %s22, 3
      %p108 = por %p106, %p107
      %p109 = scmp.ne.s32.totalorder %s98, %s99
      %p110 = scmp.eq.s32.totalorder %s22, 0
      %p111 = por %p109, %p110
      %p112 = scmp.ne.s32.totalorder %s98, %s99
      %p113 = scmp.eq.s32.totalorder %s23, 3
      %p114 = por %p112, %p113
      %p116 = scmp.ne.s32.totalorder %s99, %s115
      %p117 = scmp.eq.s32.totalorder %s23, 0
      %p118 = por %p116, %p117
      %p119 = scmp.le.s32.totalorder 1, %s17
      %p120 = scmp.lt.s32.totalorder %s17, 5
      %p121 = pnand %p119, %p120
      %p122 = pneg %p121
      // Predicated region
      $region9: #{tpu_custom_call.1} parent=5 // pred_check
        _
      $region10: #{tpu_custom_call.1} parent=5 // pred_check_branch
        %124 = sbr.rel (%p121) target = $region12
      $region11: #{tpu_custom_call.1} parent=5 // pred_region
        %s125 = ssub.s32 %s17, 1
      $region12: #{tpu_custom_call.1} parent=5 // pred_fallthru
        _
      %p126 = scmp.lt.s32.totalorder %s17, 4
      // Predicated region
      $region13: #{tpu_custom_call.1} parent=5 // pred_check
        %p127 = pneg %p126
      $region14: #{tpu_custom_call.1} parent=5 // pred_check_branch
        %129 = sbr.rel (%p127) target = $region16
      $region15: #{tpu_custom_call.1} parent=5 // pred_region
        // Predicated region
        $region17: #{tpu_custom_call.1} parent=15 // pred_check
          %p130 = pneg %p51
        $region18: #{tpu_custom_call.1} parent=15 // pred_check_branch
          %132 = sbr.rel (%p130) target = $region20
        $region19: #{tpu_custom_call.1} parent=15 // pred_region
          %s133 = sand.u32 %s41, 1
          %s134 = scalar_lea.sflag [#allocation3], %s133
          %s135 = sand.u32 %s41, 1
          %s136 = smul.addr %s135, 8
          %s137 = scalar_lea.vmem [#allocation2], %s136
          %s139 = ssub.s32 128, 128
          %140 = vsyncadd %s134, %s139
          %s141 = smul.addr %s25, 4
          %s142 = smul.addr %s24, 4
          %s143 = sadd.s32 %s141, %s142
          %s144 = smul.addr %s143, 32
          %s145 = scalar_lea.hbm %s0, %s144
          %s147 = sshll.u32 %s137, 4
          %s148 = int_to_ptr.vmem [resolvable:$true] %s147
          %150 = dma.hbm_to_vmem [thread:$0]  %s145, 128, %s148, %s134
        $region20: #{tpu_custom_call.1} parent=15 // pred_fallthru
          _
        // Predicated region
        $region21: #{tpu_custom_call.1} parent=15 // pred_check
          %p151 = pneg %p79
        $region22: #{tpu_custom_call.1} parent=15 // pred_check_branch
          %153 = sbr.rel (%p151) target = $region24
        $region23: #{tpu_custom_call.1} parent=15 // pred_region
          %s154 = sand.u32 %s69, 1
          %s155 = scalar_lea.sflag [#allocation6], %s154
          %s156 = sand.u32 %s69, 1
          %s157 = smul.addr %s156, 8
          %s158 = scalar_lea.vmem [#allocation5], %s157
          %s160 = ssub.s32 128, 128
          %161 = vsyncadd %s155, %s160
          %s162 = smul.addr %s25, 4
          %s163 = smul.addr %s24, 4
          %s164 = sadd.s32 %s162, %s163
          %s165 = smul.addr %s164, 32
          %s166 = scalar_lea.hbm %s1, %s165
          %s168 = sshll.u32 %s158, 4
          %s169 = int_to_ptr.vmem [resolvable:$true] %s168
          %171 = dma.hbm_to_vmem [thread:$0]  %s166, 128, %s169, %s155
        $region24: #{tpu_custom_call.1} parent=15 // pred_fallthru
          _
      $region16: #{tpu_custom_call.1} parent=5 // pred_fallthru
        _
      %p172 = scmp.le.s32.totalorder 1, %s17
      %p173 = scmp.lt.s32.totalorder %s17, 5
      %p174 = pnand %p172, %p173
      %p175 = pneg %p174
      // Predicated region
      $region25: #{tpu_custom_call.1} parent=5 // pred_check
        _
      $region26: #{tpu_custom_call.1} parent=5 // pred_check_branch
        %177 = sbr.rel (%p174) target = $region28
      $region27: #{tpu_custom_call.1} parent=5 // pred_region
        %s178 = ssub.s32 %s17, 1
        %s179 = sand.u32 %s44, 1
        %s180 = scalar_lea.sflag [#allocation3], %s179
        %s181 = sand.u32 %s44, 1
        %s182 = smul.addr %s181, 8
        %s183 = scalar_lea.vmem [#allocation2], %s182
        // Predicated region
        $region29: #{tpu_custom_call.1} parent=27 // pred_check
          %p184 = pneg %p57
        $region30: #{tpu_custom_call.1} parent=27 // pred_check_branch
          %186 = sbr.rel (%p184) target = $region32
        $region31: #{tpu_custom_call.1} parent=27 // pred_region
          %187 = dma.done %s180, 128
        $region32: #{tpu_custom_call.1} parent=27 // pred_fallthru
          _
        %s188 = sand.u32 %s72, 1
        %s189 = scalar_lea.sflag [#allocation6], %s188
        %s190 = sand.u32 %s72, 1
        %s191 = smul.addr %s190, 8
        %s192 = scalar_lea.vmem [#allocation5], %s191
        // Predicated region
        $region33: #{tpu_custom_call.1} parent=27 // pred_check
          %p193 = pneg %p85
        $region34: #{tpu_custom_call.1} parent=27 // pred_check_branch
          %195 = sbr.rel (%p193) target = $region36
        $region35: #{tpu_custom_call.1} parent=27 // pred_region
          %196 = dma.done %s189, 128
        $region36: #{tpu_custom_call.1} parent=27 // pred_fallthru
          _
        %s197 = sand.u32 %s44, 1
        %s198 = scalar_lea.sflag [#allocation3], %s197
        %s199 = sand.u32 %s44, 1
        %s200 = smul.addr %s199, 8
        %s201 = scalar_lea.vmem [#allocation2], %s200
        %p202 = pneg %p57
        %p203 = pneg %p54
        %s204 = sand.u32 %s72, 1
        %s205 = scalar_lea.sflag [#allocation6], %s204
        %s206 = sand.u32 %s72, 1
        %s207 = smul.addr %s206, 8
        %s208 = scalar_lea.vmem [#allocation5], %s207
        %p209 = pneg %p85
        %p210 = pneg %p82
        %p211 = pneg %p111
        %p212 = pneg %p108
        %s213 = sand.u32 %s98, 1
        %s214 = scalar_lea.sflag [#allocation4], %s213
        %s215 = sand.u32 %s98, 1
        %s216 = scalar_lea.vmem [#allocation7], %s215
        %v217 = vld [vmem:[%s183] sm:$0xff]
        %v218 = vld [vmem:[%s192] sm:$0xff]
        %v219 = vsub.f32 %v217, %v218
        %v220 = vmul.f32 %v219, %v219
        %v222 = vcombine.high %v220, %v220
        %v224 = vunpack.c.l.s4 1983009808
        %v225 = vunpack.c.0.s8 %v224
        %v226 = vlaneseq
        %v227 = vshrl.u32 %v226, 7
        %v228 = vsub.s32 %v225, %v227
        %v229 = vrot.slane %v220, %v228
        %v231 = vunpack.c.l.s4 1983009808
        %v232 = vunpack.c.0.s8 %v231
        %v233 = vlaneseq
        %v234 = vshrl.u32 %v233, 7
        %v235 = vsub.s32 %v232, %v234
        %v236 = vrot.slane %v222, %v235
        %v237 = vcombine.high %v229, %v229
        %v238 = vcombine.high %v236, %v236
        %vm243 = vcmask 1041408
        %v244 = vsel %vm243, %v229, 0.0
        %v245 = vsel %vm243, %v237, 0.0
        %v246 = vadd.f32 %v244, %v245
        %v247 = vsel %vm243, %v236, 0.0
        %v248 = vadd.f32 %v246, %v247
        %v249 = vsel %vm243, %v238, 0.0
        %v250 = vadd.f32 %v248, %v249
        %251 = vadd.xlane.f32.xlu0 %v250
        %v252 = vpop.xlane.xlu0 %251
        %v253 = vrot.slane %v252, 4
        %v254 = vadd.f32 %v252, %v253
        %v255 = vrot.slane %v254, 2
        %v256 = vadd.f32 %v254, %v255
        %v257 = vrot.slane %v256, 1
        %v258 = vadd.f32 %v256, %v257
        %s259 = vtos %v258
        %v260 = vlaneseq
        %v261 = vand.u32 %v260, 127
        %p262 = scmp.eq.s32.totalorder %s27, 0
        // Predicated region
        $region37: #{tpu_custom_call.1} parent=27 // pred_check
          %p263 = pneg %p262
        $region38: #{tpu_custom_call.1} parent=27 // pred_check_branch
          %265 = sbr.rel (%p263) target = $region40
        $region39: #{tpu_custom_call.1} parent=27 // pred_region
          %266 = vst [vmem:[%s216] sm:$0x1] 0.0
        $region40: #{tpu_custom_call.1} parent=27 // pred_fallthru
          _
        %v267 = vld [vmem:[%s216] sm:$0x1]
        %vm268 = vcmp.eq.s32.totalorder %v261, 0
        %v269 = vstv %s259
        %v270 = vsel %vm268, %v269, 0.0
        %v271 = vadd.f32 %v267, %v270
        %272 = vst [vmem:[%s216] sm:$0x1] %v271
        %s273 = smul.u32 %s27, 1024
        %s274 = sadd.s32 %s273, 1024
        %p275 = scmp.le.s32.totalorder %s274, 256
        // Predicated region
        $region41: #{tpu_custom_call.1} parent=27 // pred_check
          %p276 = pneg %p275
        $region42: #{tpu_custom_call.1} parent=27 // pred_check_branch
          %278 = sbr.rel (%p276) target = $region44
        $region43: #{tpu_custom_call.1} parent=27 // pred_region
          %v279 = vld [vmem:[%s216] sm:$0x1]
          %v281 = vcombine.high %v218, %v218
          %v283 = vunpack.c.l.s4 1983009808
          %v284 = vunpack.c.0.s8 %v283
          %v285 = vlaneseq
          %v286 = vshrl.u32 %v285, 7
          %v287 = vsub.s32 %v284, %v286
          %v288 = vrot.slane %v218, %v287
          %v290 = vunpack.c.l.s4 1983009808
          %v291 = vunpack.c.0.s8 %v290
          %v292 = vlaneseq
          %v293 = vshrl.u32 %v292, 7
          %v294 = vsub.s32 %v291, %v293
          %v295 = vrot.slane %v281, %v294
          %v296 = vcombine.high %v288, %v288
          %v297 = vcombine.high %v295, %v295
          %v302 = vsel %vm243, %v288, 0.0
          %v303 = vsel %vm243, %v296, 0.0
          %v304 = vadd.f32 %v302, %v303
          %v305 = vsel %vm243, %v295, 0.0
          %v306 = vadd.f32 %v304, %v305
          %v307 = vsel %vm243, %v297, 0.0
          %v308 = vadd.f32 %v306, %v307
          %309 = vadd.xlane.f32.xlu0 %v308
          %v310 = vpop.xlane.xlu0 %309
          %v311 = vrot.slane %v310, 4
          %v312 = vadd.f32 %v310, %v311
          %v313 = vrot.slane %v312, 2
          %v314 = vadd.f32 %v312, %v313
          %v315 = vrot.slane %v314, 1
          %v316 = vadd.f32 %v314, %v315
          %s317 = vtos %v316
          %v319 = vcombine.high %v217, %v217
          %v321 = vunpack.c.l.s4 1983009808
          %v322 = vunpack.c.0.s8 %v321
          %v323 = vlaneseq
          %v324 = vshrl.u32 %v323, 7
          %v325 = vsub.s32 %v322, %v324
          %v326 = vrot.slane %v217, %v325
          %v328 = vunpack.c.l.s4 1983009808
          %v329 = vunpack.c.0.s8 %v328
          %v330 = vlaneseq
          %v331 = vshrl.u32 %v330, 7
          %v332 = vsub.s32 %v329, %v331
          %v333 = vrot.slane %v319, %v332
          %v334 = vcombine.high %v326, %v326
          %v335 = vcombine.high %v333, %v333
          %v340 = vsel %vm243, %v326, 0.0
          %v341 = vsel %vm243, %v334, 0.0
          %v342 = vadd.f32 %v340, %v341
          %v343 = vsel %vm243, %v333, 0.0
          %v344 = vadd.f32 %v342, %v343
          %v345 = vsel %vm243, %v335, 0.0
          %v346 = vadd.f32 %v344, %v345
          %347 = vadd.xlane.f32.xlu0 %v346
          %v348 = vpop.xlane.xlu0 %347
          %v349 = vrot.slane %v348, 4
          %v350 = vadd.f32 %v348, %v349
          %v351 = vrot.slane %v350, 2
          %v352 = vadd.f32 %v350, %v351
          %v353 = vrot.slane %v352, 1
          %v354 = vadd.f32 %v352, %v353
          %s355 = vtos %v354
          %v356 = vmul.f32 %v217, %v218
          %v358 = vcombine.high %v356, %v356
          %v360 = vunpack.c.l.s4 1983009808
          %v361 = vunpack.c.0.s8 %v360
          %v362 = vlaneseq
          %v363 = vshrl.u32 %v362, 7
          %v364 = vsub.s32 %v361, %v363
          %v365 = vrot.slane %v356, %v364
          %v367 = vunpack.c.l.s4 1983009808
          %v368 = vunpack.c.0.s8 %v367
          %v369 = vlaneseq
          %v370 = vshrl.u32 %v369, 7
          %v371 = vsub.s32 %v368, %v370
          %v372 = vrot.slane %v358, %v371
          %v373 = vcombine.high %v365, %v365
          %v374 = vcombine.high %v372, %v372
          %v379 = vsel %vm243, %v365, 0.0
          %v380 = vsel %vm243, %v373, 0.0
          %v381 = vadd.f32 %v379, %v380
          %v382 = vsel %vm243, %v372, 0.0
          %v383 = vadd.f32 %v381, %v382
          %v384 = vsel %vm243, %v374, 0.0
          %v385 = vadd.f32 %v383, %v384
          %386 = vadd.xlane.f32.xlu0 %v385
          %v387 = vpop.xlane.xlu0 %386
          %v388 = vrot.slane %v387, 4
          %v389 = vadd.f32 %v387, %v388
          %v390 = vrot.slane %v389, 2
          %v391 = vadd.f32 %v389, %v390
          %v392 = vrot.slane %v391, 1
          %v393 = vadd.f32 %v391, %v392
          %s394 = vtos %v393
          %vm395 = vcmp.eq.s32.totalorder %v261, 1
          %v396 = vstv %s317
          %v397 = vsel %vm395, %v396, 0.0
          %vm398 = vcmp.eq.s32.totalorder %v261, 2
          %v399 = vstv %s355
          %v400 = vsel %vm398, %v399, 0.0
          %v401 = vadd.f32 %v397, %v400
          %vm402 = vcmp.eq.s32.totalorder %v261, 3
          %v403 = vstv %s394
          %v404 = vsel %vm402, %v403, 0.0
          %v405 = vadd.f32 %v401, %v404
          %v406 = vadd.f32 %v279, %v405
          %407 = vst [vmem:[%s216] sm:$0x1] %v406
        $region44: #{tpu_custom_call.1} parent=27 // pred_fallthru
          _
        %p408 = scmp.lt.s32.totalorder %s273, 256
        %p409 = scmp.gt.s32.totalorder %s274, 256
        %p410 = pnand %p408, %p409
        %p411 = pneg %p410
        // Predicated region
        $region45: #{tpu_custom_call.1} parent=27 // pred_check
          _
        $region46: #{tpu_custom_call.1} parent=27 // pred_check_branch
          %413 = sbr.rel (%p410) target = $region48
        $region47: #{tpu_custom_call.1} parent=27 // pred_region
          %v414 = vlaneseq
          %v415 = vshrl.u32 %v414, 7
          %v416 = vmul.u32 %v415, 512
          %v417 = vstv %s273
          %v418 = vadd.s32 %v417, %v416
          %v419 = vadd.s32 %v261, 128
          %v420 = vadd.s32 %v261, 256
          %v421 = vadd.s32 %v261, 384
          %v422 = vadd.s32 %v418, %v261
          %v423 = vadd.s32 %v418, %v419
          %v424 = vadd.s32 %v418, %v420
          %v425 = vadd.s32 %v418, %v421
          %vm426 = vcmp.lt.s32.totalorder %v422, 256
          %vm427 = vcmp.lt.s32.totalorder %v423, 256
          %vm428 = vcmp.lt.s32.totalorder %v424, 256
          %vm429 = vcmp.lt.s32.totalorder %v425, 256
          %v431 = vcombine.high %v217, %v217
          %v433 = vunpack.c.l.s4 1983009808
          %v434 = vunpack.c.0.s8 %v433
          %v435 = vlaneseq
          %v436 = vshrl.u32 %v435, 7
          %v437 = vsub.s32 %v434, %v436
          %v438 = vrot.slane %v217, %v437
          %v440 = vunpack.c.l.s4 1983009808
          %v441 = vunpack.c.0.s8 %v440
          %v442 = vlaneseq
          %v443 = vshrl.u32 %v442, 7
          %v444 = vsub.s32 %v441, %v443
          %v445 = vrot.slane %v431, %v444
          %v446 = vcombine.high %v438, %v438
          %v447 = vcombine.high %v445, %v445
          %v452 = vsel %vm426, %v438, 0.0
          %v453 = vsel %vm427, %v446, 0.0
          %v454 = vsel %vm428, %v445, 0.0
          %v455 = vsel %vm429, %v447, 0.0
          %v457 = vcombine.high %v218, %v218
          %v459 = vunpack.c.l.s4 1983009808
          %v460 = vunpack.c.0.s8 %v459
          %v461 = vlaneseq
          %v462 = vshrl.u32 %v461, 7
          %v463 = vsub.s32 %v460, %v462
          %v464 = vrot.slane %v218, %v463
          %v466 = vunpack.c.l.s4 1983009808
          %v467 = vunpack.c.0.s8 %v466
          %v468 = vlaneseq
          %v469 = vshrl.u32 %v468, 7
          %v470 = vsub.s32 %v467, %v469
          %v471 = vrot.slane %v457, %v470
          %v472 = vcombine.high %v464, %v464
          %v473 = vcombine.high %v471, %v471
          %v478 = vsel %vm426, %v464, 0.0
          %v479 = vsel %vm427, %v472, 0.0
          %v480 = vsel %vm428, %v471, 0.0
          %v481 = vsel %vm429, %v473, 0.0
          %v482 = vld [vmem:[%s216] sm:$0x1]
          %v483 = vsel %vm243, %v478, 0.0
          %v484 = vsel %vm243, %v479, 0.0
          %v485 = vadd.f32 %v483, %v484
          %v486 = vsel %vm243, %v480, 0.0
          %v487 = vadd.f32 %v485, %v486
          %v488 = vsel %vm243, %v481, 0.0
          %v489 = vadd.f32 %v487, %v488
          %490 = vadd.xlane.f32.xlu0 %v489
          %v491 = vpop.xlane.xlu0 %490
          %v492 = vrot.slane %v491, 4
          %v493 = vadd.f32 %v491, %v492
          %v494 = vrot.slane %v493, 2
          %v495 = vadd.f32 %v493, %v494
          %v496 = vrot.slane %v495, 1
          %v497 = vadd.f32 %v495, %v496
          %s498 = vtos %v497
          %v499 = vsel %vm243, %v452, 0.0
          %v500 = vsel %vm243, %v453, 0.0
          %v501 = vadd.f32 %v499, %v500
          %v502 = vsel %vm243, %v454, 0.0
          %v503 = vadd.f32 %v501, %v502
          %v504 = vsel %vm243, %v455, 0.0
          %v505 = vadd.f32 %v503, %v504
          %506 = vadd.xlane.f32.xlu0 %v505
          %v507 = vpop.xlane.xlu0 %506
          %v508 = vrot.slane %v507, 4
          %v509 = vadd.f32 %v507, %v508
          %v510 = vrot.slane %v509, 2
          %v511 = vadd.f32 %v509, %v510
          %v512 = vrot.slane %v511, 1
          %v513 = vadd.f32 %v511, %v512
          %s514 = vtos %v513
          %v515 = vmul.f32 %v452, %v478
          %v516 = vmul.f32 %v453, %v479
          %v517 = vmul.f32 %v454, %v480
          %v518 = vmul.f32 %v455, %v481
          %v519 = vsel %vm243, %v515, 0.0
          %v520 = vsel %vm243, %v516, 0.0
          %v521 = vadd.f32 %v519, %v520
          %v522 = vsel %vm243, %v517, 0.0
          %v523 = vadd.f32 %v521, %v522
          %v524 = vsel %vm243, %v518, 0.0
          %v525 = vadd.f32 %v523, %v524
          %526 = vadd.xlane.f32.xlu0 %v525
          %v527 = vpop.xlane.xlu0 %526
          %v528 = vrot.slane %v527, 4
          %v529 = vadd.f32 %v527, %v528
          %v530 = vrot.slane %v529, 2
          %v531 = vadd.f32 %v529, %v530
          %v532 = vrot.slane %v531, 1
          %v533 = vadd.f32 %v531, %v532
          %s534 = vtos %v533
          %vm535 = vcmp.eq.s32.totalorder %v261, 1
          %v536 = vstv %s498
          %v537 = vsel %vm535, %v536, 0.0
          %vm538 = vcmp.eq.s32.totalorder %v261, 2
          %v539 = vstv %s514
          %v540 = vsel %vm538, %v539, 0.0
          %v541 = vadd.f32 %v537, %v540
          %vm542 = vcmp.eq.s32.totalorder %v261, 3
          %v543 = vstv %s534
          %v544 = vsel %vm542, %v543, 0.0
          %v545 = vadd.f32 %v541, %v544
          %v546 = vadd.f32 %v482, %v545
          %547 = vst [vmem:[%s216] sm:$0x1] %v546
        $region48: #{tpu_custom_call.1} parent=27 // pred_fallthru
          _
        %s548 = sand.u32 %s98, 1
        %s549 = scalar_lea.sflag [#allocation4], %s548
        %s550 = sand.u32 %s98, 1
        %s551 = scalar_lea.vmem [#allocation7], %s550
        // Predicated region
        $region49: #{tpu_custom_call.1} parent=27 // pred_check
          %p552 = pneg %p108
        $region50: #{tpu_custom_call.1} parent=27 // pred_check_branch
          %554 = sbr.rel (%p552) target = $region52
        $region51: #{tpu_custom_call.1} parent=27 // pred_region
          %s556 = ssub.s32 16, 16
          %557 = vsyncadd %s549, %s556
          %s558 = smul.addr %s26, 16
          %s559 = scalar_lea.hbm %s2, %s558
          %s561 = sshll.u32 %s551, 4
          %s562 = int_to_ptr.vmem [resolvable:$true] %s561
          %564 = dma.vmem_to_hbm [thread:$0]  %s562, 16, %s559, %s549
        $region52: #{tpu_custom_call.1} parent=27 // pred_fallthru
          _
      $region28: #{tpu_custom_call.1} parent=5 // pred_fallthru
        _
      %p565 = scmp.le.s32.totalorder 2, %s17
      // Predicated region
      $region53: #{tpu_custom_call.1} parent=5 // pred_check
        %p566 = pneg %p565
      $region54: #{tpu_custom_call.1} parent=5 // pred_check_branch
        %568 = sbr.rel (%p566) target = $region56
      $region55: #{tpu_custom_call.1} parent=5 // pred_region
        %s569 = ssub.s32 %s17, 2
        // Predicated region
        $region57: #{tpu_custom_call.1} parent=55 // pred_check
          %p570 = pneg %p114
        $region58: #{tpu_custom_call.1} parent=55 // pred_check_branch
          %572 = sbr.rel (%p570) target = $region60
        $region59: #{tpu_custom_call.1} parent=55 // pred_region
          %s573 = sand.u32 %s99, 1
          %s574 = scalar_lea.sflag [#allocation4], %s573
          %s575 = sand.u32 %s99, 1
          %s576 = scalar_lea.vmem [#allocation7], %s575
          %577 = dma.done %s574, 16
        $region60: #{tpu_custom_call.1} parent=55 // pred_fallthru
          _
      $region56: #{tpu_custom_call.1} parent=5 // pred_fallthru
        _
    $region6: #{tpu_custom_call.1} parent=1 // loop_footer
      %s21 = sadd.s32 1, %s17
    $region7: #{tpu_custom_call.1} parent=1 // loop_footer_branch
      %16 = sbr.rel target = $region3
    $region8: #{tpu_custom_call.1} parent=1 // loop_exit
      _
    %578 = vsyncpa [#allocation3], 1
    %s579 = scalar_lea.sflag [#allocation3], 1
    %580 = vsyncpa %s579, 1
    %581 = vsyncpa [#allocation6], 1
    %s582 = scalar_lea.sflag [#allocation6], 1
    %583 = vsyncpa %s582, 1
    %584 = vsyncpa [#allocation4], 1
    %s585 = scalar_lea.sflag [#allocation4], 1
    %586 = vsyncpa %s585, 1

</llo_original>
